<compile_context>
chip_gen: v5e
topology: v5e:2x2
jax: 0.10.0
libtpu: 0.0.40
codegen_flags: <defaults>
</compile_context>

<pallas_src>
import functools

import jax
import jax.numpy as jnp
from jax import lax
from jax.experimental import pallas as pl
from jax.experimental.pallas import tpu as pltpu


def _cdiv(a, b):
    return (a + b - 1) // b


def _round_up(n, m):
    return ((n + m - 1) // m) * m


def _sublane_mult(dtype):
    # Sublane tile for packed dtypes: f32 -> 8, bf16 -> 16, int8 -> 32.
    return 8 * (4 // jnp.dtype(dtype).itemsize)


def _bias_relu_layernorm(h, p, eps):
    """h: (TB, Dout) f32 pre-activation; p: (3, Dout) f32 = (bias, gamma, beta)."""
    h = h + p[0:1, :]
    h = jnp.maximum(h, 0.0)                       # ReLU
    mean = jnp.mean(h, axis=-1, keepdims=True)    # LayerNorm, f32 math
    centered = h - mean
    var = jnp.mean(centered * centered, axis=-1, keepdims=True)
    return centered * lax.rsqrt(var + eps) * p[1:2, :] + p[2:3, :]


def _mlp_block_kernel(x_ref, c_ref, wx_ref, wc_ref, p_ref, o_ref, *, eps):
    # Linear split over [x | context]: (TB,Fx)@(Fx,Dout) + (TB,Fc)@(Fc,Dout).
    h = jnp.dot(x_ref[...], wx_ref[...], preferred_element_type=jnp.float32)
    h = h + jnp.dot(c_ref[...], wc_ref[...], preferred_element_type=jnp.float32)
    o_ref[...] = _bias_relu_layernorm(h, p_ref[...], eps).astype(o_ref.dtype)


def _mlp_block_kernel_nocontext(x_ref, w_ref, p_ref, o_ref, *, eps):
    h = jnp.dot(x_ref[...], w_ref[...], preferred_element_type=jnp.float32)
    o_ref[...] = _bias_relu_layernorm(h, p_ref[...], eps).astype(o_ref.dtype)


def mlp_block(x, context, w, b, gamma, beta, *, eps=1e-5, tb=2048, out_dtype=None):
    """MLPBlock forward.

    x:       (B, in_features)
    context: (B, context_dim) or None
    w:       (in_features + context_dim, out_features)  (already transposed vs torch)
    b, gamma, beta: (out_features,)
    out_dtype: output dtype (defaults to x.dtype; pass jnp.bfloat16 to halve
               the output HBM stream if the consumer tolerates it).
    """
    B, in_features = x.shape
    Dout = w.shape[1]
    out_dtype = x.dtype if out_dtype is None else jnp.dtype(out_dtype)

    # Sublane multiple for every array whose second-minor dim is the batch tile.
    sub = max(_sublane_mult(x.dtype), _sublane_mult(out_dtype))
    if context is not None:
        sub = max(sub, _sublane_mult(context.dtype))

    # Batch tile: as large as possible (amortize ~0.35 us/step grid overhead),
    # but keep >= 2 grid steps when B allows it so both v7x TCs are fed.
    tb_eff = max(sub, min(int(tb), _round_up(_cdiv(B, 2), sub)))
    grid = (_cdiv(B, tb_eff),)

    # VMEM estimate (lane-padded to 128, sublane-padded), double-buffered.
    def padded(rows, cols, itemsize, row_mult):
        return _round_up(rows, row_mult) * _round_up(cols, 128) * itemsize

    act_it = jnp.dtype(x.dtype).itemsize
    w_it = jnp.dtype(w.dtype).itemsize
    out_it = jnp.dtype(out_dtype).itemsize
    cd = 0 if context is None else context.shape[1]
    est = (2 * padded(tb_eff, in_features, act_it, sub)
           + 2 * padded(tb_eff, cd, act_it, sub)
           + 2 * padded(tb_eff, Dout, out_it, sub)
           + 2 * padded(in_features, Dout, w_it, 8)
           + 2 * padded(cd, Dout, w_it, 8)
           + 2 * padded(3, Dout, 4, 8)
           + 4 * padded(tb_eff, Dout, 4, 8))   # in-kernel f32 temporaries

    try:
        vmem_cap = int(pltpu.get_tpu_info().vmem_capacity_bytes)
    except Exception:  # pragma: no cover - conservative fallback
        vmem_cap = 64 * 1024 * 1024
    cap = int(0.75 * vmem_cap)                 # ~48 MiB on v7x, ~96 MiB on v5e/v6e
    vmem_limit = int(min(max(2 * est, 32 * 1024 * 1024), cap))

    # Fuse (bias, gamma, beta) into one parameter block (one DMA per buffer).
    params = jnp.stack([b, gamma, beta]).astype(jnp.float32)  # (3, Dout)

    cparams = pltpu.CompilerParams(
        dimension_semantics=("parallel",),
        vmem_limit_bytes=vmem_limit,
    )

    if context is None:
        return pl.pallas_call(
            functools.partial(_mlp_block_kernel_nocontext, eps=eps),
            out_shape=jax.ShapeDtypeStruct((B, Dout), out_dtype),
            grid_spec=pltpu.PrefetchScalarGridSpec(
                num_scalar_prefetch=0,
                grid=grid,
                in_specs=[
                    pl.BlockSpec((tb_eff, in_features), lambda i: (i, 0)),  # x tile
                    pl.BlockSpec((in_features, Dout), lambda i: (0, 0)),    # W (resident)
                    pl.BlockSpec((3, Dout), lambda i: (0, 0)),              # bias/gamma/beta
                ],
                out_specs=pl.BlockSpec((tb_eff, Dout), lambda i: (i, 0)),
            ),
            compiler_params=cparams,
        )(x, w, params)

    w_x, w_c = w[:in_features], w[in_features:]
    Cd = context.shape[1]
    return pl.pallas_call(
        functools.partial(_mlp_block_kernel, eps=eps),
        out_shape=jax.ShapeDtypeStruct((B, Dout), out_dtype),
        grid_spec=pltpu.PrefetchScalarGridSpec(
            num_scalar_prefetch=0,
            grid=grid,
            in_specs=[
                pl.BlockSpec((tb_eff, in_features), lambda i: (i, 0)),  # x tile
                pl.BlockSpec((tb_eff, Cd), lambda i: (i, 0)),           # context tile
                pl.BlockSpec((in_features, Dout), lambda i: (0, 0)),    # W_top (resident)
                pl.BlockSpec((Cd, Dout), lambda i: (0, 0)),             # W_bot (resident)
                pl.BlockSpec((3, Dout), lambda i: (0, 0)),              # bias/gamma/beta
            ],
            out_specs=pl.BlockSpec((tb_eff, Dout), lambda i: (i, 0)),
        ),
        compiler_params=cparams,
    )(x, context, w_x, w_c, params)


def mlp_block_ref(x, context, w, b, gamma, beta, eps=1e-5):
    """Pure-JAX reference matching the PyTorch forward."""
    if context is not None:
        x = jnp.concatenate([x, context], axis=1)
    h = x.astype(jnp.float32) @ w.astype(jnp.float32) + b
    h = jnp.maximum(h, 0.0)
    mean = jnp.mean(h, axis=-1, keepdims=True)
    var = jnp.mean((h - mean) ** 2, axis=-1, keepdims=True)
    return (h - mean) / jnp.sqrt(var + eps) * gamma + beta


if __name__ == "__main__":
    in_features = 24
    context_dim = 8
    out_features = 128
    Din = in_features + context_dim

    key = jax.random.PRNGKey(0)
    kx, kc, kw, kb = jax.random.split(key, 4)

    # Deterministic init matching nn.Linear's U(-1/sqrt(fan_in), 1/sqrt(fan_in)).
    bound = 1.0 / jnp.sqrt(jnp.float32(Din))
    w = jax.random.uniform(kw, (Din, out_features), jnp.float32, -bound, bound)
    b = jax.random.uniform(kb, (out_features,), jnp.float32, -bound, bound)
    gamma = jnp.ones((out_features,), jnp.float32)   # LayerNorm defaults
    beta = jnp.zeros((out_features,), jnp.float32)

    # --- Small-shape check (matches the module's toy scale) ---
    B = 8
    x = jax.random.normal(kx, (B, in_features), dtype=jnp.float32)
    context = jax.random.normal(kc, (B, context_dim), dtype=jnp.float32)

    out = jax.block_until_ready(mlp_block(x, context, w, b, gamma, beta))
    ref = mlp_block_ref(x, context, w, b, gamma, beta)
    assert out.shape == (B, out_features)
    assert jnp.allclose(out, ref, atol=1e-4, rtol=1e-4), "mismatch vs reference (B=8)"

    # --- Ragged-batch check (exercises cdiv grid + masked tail block) ---
    B2 = 300
    kx2, kc2 = jax.random.split(jax.random.PRNGKey(1), 2)
    x2 = jax.random.normal(kx2, (B2, in_features), dtype=jnp.float32)
    c2 = jax.random.normal(kc2, (B2, context_dim), dtype=jnp.float32)

    out2 = jax.block_until_ready(mlp_block(x2, c2, w, b, gamma, beta))
    ref2 = mlp_block_ref(x2, c2, w, b, gamma, beta)
    assert out2.shape == (B2, out_features)
    assert jnp.allclose(out2, ref2, atol=1e-4, rtol=1e-4), "mismatch vs reference (B=300)"

    # --- No-context path (dedicated kernel, context_dim=0 module config) ---
    w_nc = w[:in_features]
    out3 = jax.block_until_ready(mlp_block(x2, None, w_nc, b, gamma, beta))
    ref3 = mlp_block_ref(x2, None, w_nc, b, gamma, beta)
    assert out3.shape == (B2, out_features)
    assert jnp.allclose(out3, ref3, atol=1e-4, rtol=1e-4), "mismatch vs reference (no-ctx)"

    # --- Optional bf16 output (halves the dominant HBM writeback stream) ---
    out4 = jax.block_until_ready(
        mlp_block(x2, c2, w, b, gamma, beta, out_dtype=jnp.bfloat16))
    assert out4.dtype == jnp.bfloat16 and out4.shape == (B2, out_features)
    assert jnp.allclose(out4.astype(jnp.float32), ref2, atol=6e-2, rtol=6e-2), \
        "mismatch vs reference (bf16 out)"

    print("KERNEL_OK")
</pallas_src>

<mosaic_0001>
module attributes {stable_mosaic.version = 11 : i64} {
  func.func @_mlp_block_kernel(%arg0: i32, %arg1: memref<8x24xf32, #tpu.memory_space<vmem>>, %arg2: memref<8x8xf32, #tpu.memory_space<vmem>>, %arg3: memref<24x128xf32, #tpu.memory_space<vmem>>, %arg4: memref<8x128xf32, #tpu.memory_space<vmem>>, %arg5: memref<3x128xf32, #tpu.memory_space<vmem>>, %arg6: memref<8x128xf32, #tpu.memory_space<vmem>>) attributes {dimension_semantics = [#tpu.dimension_semantics<parallel>], iteration_bounds = array<i64: 1>, scalar_prefetch = 0 : i64, scratch_operands = 0 : i64, tpu.core_type = #tpu.core_type<tc>, window_params = [{transform_indices = @transform_0, window_bounds = array<i64: 8, 24>}, {transform_indices = @transform_1, window_bounds = array<i64: 8, 8>}, {pipeline_mode = #tpu.pipeline_mode<synchronous>, transform_indices = @transform_2, window_bounds = array<i64: 24, 128>}, {pipeline_mode = #tpu.pipeline_mode<synchronous>, transform_indices = @transform_3, window_bounds = array<i64: 8, 128>}, {pipeline_mode = #tpu.pipeline_mode<synchronous>, transform_indices = @transform_4, window_bounds = array<i64: 3, 128>}, {transform_indices = @transform_5, window_bounds = array<i64: 8, 128>}]} {
    %c0 = arith.constant 0 : index
    %c0_0 = arith.constant 0 : index
    %0 = vector.load %arg1[%c0, %c0_0] : memref<8x24xf32, #tpu.memory_space<vmem>>, vector<8x24xf32>
    %c0_1 = arith.constant 0 : index
    %c0_2 = arith.constant 0 : index
    %1 = vector.load %arg3[%c0_1, %c0_2] : memref<24x128xf32, #tpu.memory_space<vmem>>, vector<24x128xf32>
    %cst = arith.constant dense<0.000000e+00> : vector<8x128xf32>
    %2 = tpu.matmul %0, %1, %cst {dimension_numbers = #tpu.dot_dimension_numbers<[1], [0], [0], [1], [0, 0, 1, 1], [], []>} : vector<8x24xf32>, vector<24x128xf32>, vector<8x128xf32> -> vector<8x128xf32>
    %c0_3 = arith.constant 0 : index
    %c0_4 = arith.constant 0 : index
    %3 = vector.load %arg2[%c0_3, %c0_4] : memref<8x8xf32, #tpu.memory_space<vmem>>, vector<8x8xf32>
    %c0_5 = arith.constant 0 : index
    %c0_6 = arith.constant 0 : index
    %4 = vector.load %arg4[%c0_5, %c0_6] : memref<8x128xf32, #tpu.memory_space<vmem>>, vector<8x128xf32>
    %cst_7 = arith.constant dense<0.000000e+00> : vector<8x128xf32>
    %5 = tpu.matmul %3, %4, %cst_7 {dimension_numbers = #tpu.dot_dimension_numbers<[1], [0], [0], [1], [0, 0, 1, 1], [], []>} : vector<8x8xf32>, vector<8x128xf32>, vector<8x128xf32> -> vector<8x128xf32>
    %6 = arith.addf %2, %5 : vector<8x128xf32>
    %c0_8 = arith.constant 0 : index
    %c0_9 = arith.constant 0 : index
    %7 = vector.load %arg5[%c0_8, %c0_9] : memref<3x128xf32, #tpu.memory_space<vmem>>, vector<3x128xf32>
    %8 = vector.extract_strided_slice %7 {offsets = [0, 0], sizes = [1, 128], strides = [1, 1]} : vector<3x128xf32> to vector<1x128xf32>
    %9 = vector.broadcast %8 : vector<1x128xf32> to vector<8x128xf32>
    %10 = arith.addf %6, %9 : vector<8x128xf32>
    %cst_10 = arith.constant 0.000000e+00 : f32
    %11 = vector.broadcast %cst_10 : f32 to vector<8x128xf32>
    %12 = arith.maximumf %10, %11 : vector<8x128xf32>
    %cst_11 = arith.constant dense<0.000000e+00> : vector<8xf32>
    %13 = vector.multi_reduction <add>, %12, %cst_11 [1] : vector<8x128xf32> to vector<8xf32>
    %14 = vector.shape_cast %13 : vector<8xf32> to vector<8x1xf32>
    %cst_12 = arith.constant 1.280000e+02 : f32
    %15 = vector.broadcast %cst_12 : f32 to vector<8x1xf32>
    %16 = arith.divf %14, %15 : vector<8x1xf32>
    %17 = vector.broadcast %16 : vector<8x1xf32> to vector<8x128xf32>
    %18 = arith.subf %12, %17 : vector<8x128xf32>
    %19 = arith.mulf %18, %18 : vector<8x128xf32>
    %cst_13 = arith.constant dense<0.000000e+00> : vector<8xf32>
    %20 = vector.multi_reduction <add>, %19, %cst_13 [1] : vector<8x128xf32> to vector<8xf32>
    %21 = vector.shape_cast %20 : vector<8xf32> to vector<8x1xf32>
    %cst_14 = arith.constant 1.280000e+02 : f32
    %22 = vector.broadcast %cst_14 : f32 to vector<8x1xf32>
    %23 = arith.divf %21, %22 : vector<8x1xf32>
    %cst_15 = arith.constant 9.99999974E-6 : f32
    %24 = vector.broadcast %cst_15 : f32 to vector<8x1xf32>
    %25 = arith.addf %23, %24 : vector<8x1xf32>
    %26 = math.rsqrt %25 : vector<8x1xf32>
    %27 = vector.broadcast %26 : vector<8x1xf32> to vector<8x128xf32>
    %28 = arith.mulf %18, %27 : vector<8x128xf32>
    %29 = vector.extract_strided_slice %7 {offsets = [1, 0], sizes = [1, 128], strides = [1, 1]} : vector<3x128xf32> to vector<1x128xf32>
    %30 = vector.broadcast %29 : vector<1x128xf32> to vector<8x128xf32>
    %31 = arith.mulf %28, %30 : vector<8x128xf32>
    %32 = vector.extract_strided_slice %7 {offsets = [2, 0], sizes = [1, 128], strides = [1, 1]} : vector<3x128xf32> to vector<1x128xf32>
    %33 = vector.broadcast %32 : vector<1x128xf32> to vector<8x128xf32>
    %34 = arith.addf %31, %33 : vector<8x128xf32>
    %c0_16 = arith.constant 0 : index
    %c0_17 = arith.constant 0 : index
    %35 = vector.load %arg6[%c0_16, %c0_17] : memref<8x128xf32, #tpu.memory_space<vmem>>, vector<8x128xf32>
    tpu.vector_store %arg6[%c0_16, %c0_17], %34 {strides = array<i32>} : memref<8x128xf32, #tpu.memory_space<vmem>>, vector<8x128xf32>,
    return
  }
  func.func @transform_0(%arg0: i32) -> (i32, i32) {
    %c0_i32 = arith.constant 0 : i32
    %c0_i32_0 = arith.constant 0 : i32
    return %arg0, %c0_i32 : i32, i32
  }
  func.func @transform_1(%arg0: i32) -> (i32, i32) {
    %c0_i32 = arith.constant 0 : i32
    %c0_i32_0 = arith.constant 0 : i32
    return %arg0, %c0_i32 : i32, i32
  }
  func.func @transform_2(%arg0: i32) -> (i32, i32) {
    %c0_i32 = arith.constant 0 : i32
    %c0_i32_0 = arith.constant 0 : i32
    %c0_i32_1 = arith.constant 0 : i32
    return %c0_i32, %c0_i32_0 : i32, i32
  }
  func.func @transform_3(%arg0: i32) -> (i32, i32) {
    %c0_i32 = arith.constant 0 : i32
    %c0_i32_0 = arith.constant 0 : i32
    %c0_i32_1 = arith.constant 0 : i32
    return %c0_i32, %c0_i32_0 : i32, i32
  }
  func.func @transform_4(%arg0: i32) -> (i32, i32) {
    %c0_i32 = arith.constant 0 : i32
    %c0_i32_0 = arith.constant 0 : i32
    %c0_i32_1 = arith.constant 0 : i32
    return %c0_i32, %c0_i32_0 : i32, i32
  }
  func.func @transform_5(%arg0: i32) -> (i32, i32) {
    %c0_i32 = arith.constant 0 : i32
    %c0_i32_0 = arith.constant 0 : i32
    return %arg0, %c0_i32 : i32, i32
  }
}

</mosaic_0001>

<llo_original>
// kernel: tpu_custom_call.1
$region0: #{tpu_custom_call.1}
  #allocation0 [shape = 'u32[]', space=smem, size = 0x4, offset = 0x4, fixed_abs, tag = 'smem constant byte address 0x4 - core index']
  #allocation1 [shape = 'u32[72,128]{1,0:T(1,128)}', space=vmem, size = 0x9000, scoped, tag = 'internal scratch']
  %s0 = inlined_call_operand.hbm [shape: f32[8,24], index: 0, kind: input, shape index: {}]
  %s1 = inlined_call_operand.hbm [shape: f32[8,8], index: 1, kind: input, shape index: {}]
  %s2 = inlined_call_operand.hbm [shape: f32[24,128], index: 2, kind: input, shape index: {}]
  %s3 = inlined_call_operand.hbm [shape: f32[8,128], index: 3, kind: input, shape index: {}]
  %s4 = inlined_call_operand.hbm [shape: f32[3,128], index: 4, kind: input, shape index: {}]
  %s5 = inlined_call_operand.hbm [shape: f32[8,128], index: 5, kind: output, shape index: {}]
  %s6 = sld [smem:[#allocation0]]
  $region50: #{tpu_custom_call.1} parent=0
    _
  %s8 = ssub.s32 1, %s6
  %s9 = scalar_select 0, %s8, %s6
  $region1: #{tpu_custom_call.1} parent=0
    #allocation2 [shape = 'u8[4096]{0}', space=vmem, size = 0x1000, scoped, tag = 'input window, operand 0, single buffered']
    #allocation3 [shape = 's32[1]{0}', space=sflag, size = 0x4, scoped, tag = 'scoped memory for tpu_custom_call.1']
    #allocation4 [shape = 's32[1]{0}', space=sflag, size = 0x4, scoped, tag = 'scoped memory for tpu_custom_call.1']
    #allocation5 [shape = 'u8[4096]{0}', space=vmem, size = 0x1000, scoped, tag = 'input window, operand 1, single buffered']
    #allocation6 [shape = 's32[1]{0}', space=sflag, size = 0x4, scoped, tag = 'scoped memory for tpu_custom_call.1']
    #allocation7 [shape = 'u8[12288]{0}', space=vmem, size = 0x3000, scoped, tag = 'input window, operand 2, single buffered']
    #allocation8 [shape = 'u8[4096]{0}', space=vmem, size = 0x1000, scoped, tag = 'input window, operand 3, single buffered']
    #allocation9 [shape = 's32[1]{0}', space=sflag, size = 0x4, scoped, tag = 'scoped memory for tpu_custom_call.1']
    #allocation10 [shape = 'u8[2048]{0}', space=vmem, size = 0x800, scoped, tag = 'input window, operand 4, single buffered']
    #allocation11 [shape = 'u8[4096]{0}', space=vmem, size = 0x1000, scoped, tag = 'output window, operand 0, single buffered']
    %10 = vsyncpa [#allocation3], 0
    %11 = vsyncpa [#allocation6], 0
    %12 = vsyncpa [#allocation9], 0
    %13 = vsyncpa [#allocation4], 0
    // Predicated region
    $region2: #{tpu_custom_call.1} parent=1 // pred_check
      _
    $region3: #{tpu_custom_call.1} parent=1 // pred_check_branch
      %15 = sbr.rel (0) target = $region5
    $region4: #{tpu_custom_call.1} parent=1 // pred_region
      %17 = vsyncadd [#allocation3], 0
      %s19 = sshll.u32 %s0, 4
      %s20 = int_to_ptr.hbm [resolvable:$true] %s19
      %s21 = sshll.u32 [#allocation2], 4
      %s22 = int_to_ptr.vmem [resolvable:$true] %s21
      %24 = dma.hbm_to_vmem [thread:$0]  %s20, 128, %s22, [#allocation3]
    $region5: #{tpu_custom_call.1} parent=1 // pred_fallthru
      _
    // Predicated region
    $region6: #{tpu_custom_call.1} parent=1 // pred_check
      _
    $region7: #{tpu_custom_call.1} parent=1 // pred_check_branch
      %26 = sbr.rel (0) target = $region9
    $region8: #{tpu_custom_call.1} parent=1 // pred_region
      %28 = vsyncadd [#allocation6], 0
      %s30 = sshll.u32 %s1, 4
      %s31 = int_to_ptr.hbm [resolvable:$true] %s30
      %s32 = sshll.u32 [#allocation5], 4
      %s33 = int_to_ptr.vmem [resolvable:$true] %s32
      %35 = dma.hbm_to_vmem [thread:$0]  %s31, 128, %s33, [#allocation6]
    $region9: #{tpu_custom_call.1} parent=1 // pred_fallthru
      _
    // Predicated region
    $region10: #{tpu_custom_call.1} parent=1 // pred_check
      _
    $region11: #{tpu_custom_call.1} parent=1 // pred_check_branch
      %37 = sbr.rel (0) target = $region13
    $region12: #{tpu_custom_call.1} parent=1 // pred_region
      %39 = vsyncadd [#allocation6], 0
      %s40 = sshll.u32 %s2, 4
      %s41 = int_to_ptr.hbm [resolvable:$true] %s40
      %s42 = sshll.u32 [#allocation7], 4
      %s43 = int_to_ptr.vmem [resolvable:$true] %s42
      %48 = dma.hbm_to_vmem [thread:$0]  %s41, 384, %s43, [#allocation6], 128, 128, 8
    $region13: #{tpu_custom_call.1} parent=1 // pred_fallthru
      _
    // Predicated region
    $region14: #{tpu_custom_call.1} parent=1 // pred_check
      _
    $region15: #{tpu_custom_call.1} parent=1 // pred_check_branch
      %50 = sbr.rel (0) target = $region17
    $region16: #{tpu_custom_call.1} parent=1 // pred_region
      %52 = vsyncadd [#allocation9], 0
      %s54 = sshll.u32 %s3, 4
      %s55 = int_to_ptr.hbm [resolvable:$true] %s54
      %s56 = sshll.u32 [#allocation8], 4
      %s57 = int_to_ptr.vmem [resolvable:$true] %s56
      %59 = dma.hbm_to_vmem [thread:$0]  %s55, 128, %s57, [#allocation9]
    $region17: #{tpu_custom_call.1} parent=1 // pred_fallthru
      _
    // Predicated region
    $region18: #{tpu_custom_call.1} parent=1 // pred_check
      _
    $region19: #{tpu_custom_call.1} parent=1 // pred_check_branch
      %61 = sbr.rel (0) target = $region21
    $region20: #{tpu_custom_call.1} parent=1 // pred_region
      %63 = vsyncadd [#allocation9], 0
      %s65 = sshll.u32 %s4, 4
      %s66 = int_to_ptr.hbm [resolvable:$true] %s65
      %s67 = sshll.u32 [#allocation10], 4
      %s68 = int_to_ptr.vmem [resolvable:$true] %s67
      %70 = dma.hbm_to_vmem [thread:$0]  %s66, 64, %s68, [#allocation9]
    $region21: #{tpu_custom_call.1} parent=1 // pred_fallthru
      _
    // Predicated region
    $region22: #{tpu_custom_call.1} parent=1 // pred_check
      _
    $region23: #{tpu_custom_call.1} parent=1 // pred_check_branch
      %72 = sbr.rel (0) target = $region25
    $region24: #{tpu_custom_call.1} parent=1 // pred_region
      %74 = dma.done [#allocation3], 128
    $region25: #{tpu_custom_call.1} parent=1 // pred_fallthru
      _
    // Predicated region
    $region26: #{tpu_custom_call.1} parent=1 // pred_check
      _
    $region27: #{tpu_custom_call.1} parent=1 // pred_check_branch
      %76 = sbr.rel (0) target = $region29
    $region28: #{tpu_custom_call.1} parent=1 // pred_region
      %78 = dma.done [#allocation6], 128
    $region29: #{tpu_custom_call.1} parent=1 // pred_fallthru
      _
    // Predicated region
    $region30: #{tpu_custom_call.1} parent=1 // pred_check
      _
    $region31: #{tpu_custom_call.1} parent=1 // pred_check_branch
      %80 = sbr.rel (0) target = $region33
    $region32: #{tpu_custom_call.1} parent=1 // pred_region
      %82 = dma.done [#allocation6], 384
    $region33: #{tpu_custom_call.1} parent=1 // pred_fallthru
      _
    // Predicated region
    $region34: #{tpu_custom_call.1} parent=1 // pred_check
      _
    $region35: #{tpu_custom_call.1} parent=1 // pred_check_branch
      %84 = sbr.rel (0) target = $region37
    $region36: #{tpu_custom_call.1} parent=1 // pred_region
      %86 = dma.done [#allocation9], 128
    $region37: #{tpu_custom_call.1} parent=1 // pred_fallthru
      _
    // Predicated region
    $region38: #{tpu_custom_call.1} parent=1 // pred_check
      _
    $region39: #{tpu_custom_call.1} parent=1 // pred_check_branch
      %88 = sbr.rel (0) target = $region41
    $region40: #{tpu_custom_call.1} parent=1 // pred_region
      %90 = dma.done [#allocation9], 64
    $region41: #{tpu_custom_call.1} parent=1 // pred_fallthru
      _
    %v91 = vld [vmem:[#allocation2] sm:$0xff]
    %v92 = vld [vmem:[#allocation7] sm:$0xff]
    %v93 = vld [vmem:[#allocation7 + $0x8] sm:$0xff]
    %v94 = vld [vmem:[#allocation7 + $0x10] sm:$0xff]
    %v95 = vld [vmem:[#allocation5] sm:$0xff]
    %v96 = vld [vmem:[#allocation8] sm:$0xff]
    %vm97 = vcmask 64512
    %v99 = vsel %vm97, %v95, 0
    %101 = vmatpush.msra.mxu0 0.0
    %102 = vmatpush.msra.mxu0 0.0
    %103 = vmatpush.msra.mxu0 0.0
    %104 = vmatpush.msra.mxu0 0.0
    %105 = vmatpush.msra.mxu0 0.0
    %106 = vmatpush.msra.mxu0 0.0
    %107 = vmatpush.msra.mxu0 0.0
    %108 = vmatpush.msra.mxu0 0.0
    %109 = vmatpush.msra.mxu0 0.0
    %110 = vmatpush.msra.mxu0 0.0
    %111 = vmatpush.msra.mxu0 0.0
    %112 = vmatpush.msra.mxu0 0.0
    %113 = vmatpush.msra.mxu0 0.0
    %114 = vmatpush.msra.mxu0 0.0
    %115 = vmatpush.msra.mxu0 0.0
    %116 = vmatpush.msra.mxu0 %v96
    %117 = vmatmul.f32.gmra.mxu0 %v99
    %v118 = vpop.f32.mrf.mxu0
    %v119 = vadd.f32 0.0, %v118
    %120 = vdwg.mxu0
    %vm121 = vcmask 195584
    %v123 = vsel %vm121, %v91, 0
    %125 = vmatpush.msra.mxu0 0.0
    %126 = vmatpush.msra.mxu0 0.0
    %127 = vmatpush.msra.mxu0 0.0
    %128 = vmatpush.msra.mxu0 0.0
    %129 = vmatpush.msra.mxu0 0.0
    %130 = vmatpush.msra.mxu0 0.0
    %131 = vmatpush.msra.mxu0 0.0
    %132 = vmatpush.msra.mxu0 0.0
    %133 = vmatpush.msra.mxu0 0.0
    %134 = vmatpush.msra.mxu0 0.0
    %135 = vmatpush.msra.mxu0 0.0
    %136 = vmatpush.msra.mxu0 0.0
    %137 = vmatpush.msra.mxu0 0.0
    %138 = vmatpush.msra.mxu0 %v94
    %139 = vmatpush.msra.mxu0 %v93
    %140 = vmatpush.msra.mxu0 %v92
    %141 = vmatmul.f32.gmra.mxu0 %v123
    %v142 = vpop.f32.mrf.mxu0
    %v143 = vadd.f32 %v119, %v142
    %144 = vdwg.mxu0
    %v145 = vld [vmem:[#allocation10] sm:$0x7]
    %v146 = vperm.slane %v145, 0
    %v147 = vadd.f32 %v143, %v146
    %v148 = vmax.f32 %v147, 0.0
    %149 = vadd.xlane.f32.xlu0 %v148
    %v150 = vpop.xlane.xlu0 %149
    %v151 = vrcp.pop 128.0
    %v152 = vmul.f32 128.0, %v151
    %v153 = vsub.f32 1.0, %v152
    %v154 = vmul.f32 %v151, %v153
    %v155 = vadd.f32 %v151, %v154
    %vm156 = vweird.f32 %v151
    %v157 = vsel %vm156, %v151, %v155
    %v158 = vmul.f32 %v150, %v157
    %v159 = vsub.f32 %v148, %v158
    %v160 = vmul.f32 %v159, %v159
    %161 = vadd.xlane.f32.xlu0 %v160
    %v162 = vpop.xlane.xlu0 %161
    %v163 = vmul.f32 %v162, %v157
    %v164 = vadd.f32 %v163, 1e-05
    %v165 = vrsqrt.pop %v164
    %v166 = vmul.f32 %v165, %v164
    %v167 = vmul.f32 %v166, %v165
    %v168 = vmul.f32 0.5, %v167
    %v169 = vsub.f32 1.5, %v168
    %v170 = vmul.f32 %v165, %v169
    %vm171 = vweird.f32 %v164
    %vm172 = vweird.f32 %v165
    %vm173 = vmor %vm171, %vm172
    %v174 = vsel %vm173, %v165, %v170
    %v175 = vmul.f32 %v159, %v174
    %v176 = vperm.slane %v145, 1
    %v177 = vmul.f32 %v175, %v176
    %v178 = vperm.slane %v145, 2
    %v179 = vadd.f32 %v177, %v178
    %180 = vst [vmem:[#allocation11] sm:$0xff] %v179
    // Predicated region
    $region42: #{tpu_custom_call.1} parent=1 // pred_check
      _
    $region43: #{tpu_custom_call.1} parent=1 // pred_check_branch
      %182 = sbr.rel (0) target = $region45
    $region44: #{tpu_custom_call.1} parent=1 // pred_region
      %184 = vsyncadd [#allocation4], 0
      %s186 = sshll.u32 [#allocation11], 4
      %s187 = int_to_ptr.vmem [resolvable:$true] %s186
      %s188 = sshll.u32 %s5, 4
      %s189 = int_to_ptr.hbm [resolvable:$true] %s188
      %191 = dma.vmem_to_hbm [thread:$0]  %s187, 128, %s189, [#allocation4]
    $region45: #{tpu_custom_call.1} parent=1 // pred_fallthru
      _
    // Predicated region
    $region46: #{tpu_custom_call.1} parent=1 // pred_check
      _
    $region47: #{tpu_custom_call.1} parent=1 // pred_check_branch
      %193 = sbr.rel (0) target = $region49
    $region48: #{tpu_custom_call.1} parent=1 // pred_region
      %195 = dma.done [#allocation4], 128
    $region49: #{tpu_custom_call.1} parent=1 // pred_fallthru
      _
    %196 = vsyncpa [#allocation3], 1
    %197 = vsyncpa [#allocation6], 1
    %198 = vsyncpa [#allocation9], 1
    %199 = vsyncpa [#allocation4], 1

</llo_original>
